<compile_context>
chip_gen: v6e
topology: v6e:2x2x1
jax: 0.10.0
libtpu: 0.0.40
codegen_flags: <defaults>
</compile_context>

<pallas_src>
import math

import jax
import jax.numpy as jnp
from jax.experimental import pallas as pl
from jax.experimental.pallas import tpu as pltpu


def _round_up(x, m):
    return (x + m - 1) // m * m


def _make_kernel(c_actual, use_bf16_matmul):
    """Builds the kernel closure over the static number of real classes."""

    def kernel(scale_ref, tcol_ref, trow_ref, xrow_ref, xk_ref, loss_ref, acc_ref):
        k = pl.program_id(1)
        nk = pl.num_programs(1)

        @pl.when(k == 0)
        def _():
            acc_ref[...] = jnp.zeros_like(acc_ref)

        # (TM, TK) same-id mask tile built on the fly (VPU compare), fed
        # straight into the MXU.  No eye, no (N, N) temporary, no divide.
        same = (tcol_ref[...] == trow_ref[...]).astype(jnp.float32)
        xk = xk_ref[...]
        if use_bf16_matmul:
            same = same.astype(jnp.bfloat16)   # 0/1 is exact in bf16
            xk = xk.astype(jnp.bfloat16)
        acc_ref[...] += jnp.dot(same, xk, preferred_element_type=jnp.float32)

        @pl.when(k == nk - 1)
        def _():
            inv_inter = scale_ref[0]                   # 1 / inter  (SMEM scalar)
            x = xrow_ref[...].astype(jnp.float32)      # (TM, C_pad), k-resident
            # (same - eye) @ x / inter  ==  (acc - x) * inv_inter
            targets = (acc_ref[...] - x) * inv_inter

            # Mask padded class columns (c_actual is static).
            col = jax.lax.broadcasted_iota(jnp.int32, x.shape, 1)
            valid = col < c_actual
            neg = jnp.float32(-1e30)

            # log_softmax(x) over the real classes only.
            xm = jnp.where(valid, x, neg)
            x_max = jnp.max(xm, axis=1, keepdims=True)
            lse = jnp.log(jnp.sum(jnp.exp(xm - x_max), axis=1, keepdims=True)) + x_max
            log_probs = x - lse

            # softmax(targets) folded into the loss:
            #   per_row = - sum_c softmax(targets)_c * log_probs_c
            tmsk = jnp.where(valid, targets, neg)
            t_max = jnp.max(tmsk, axis=1, keepdims=True)
            t_exp = jnp.exp(tmsk - t_max)
            t_sum = jnp.sum(t_exp, axis=1, keepdims=True)
            num = jnp.sum(jnp.where(valid, t_exp * log_probs, 0.0),
                          axis=1, keepdims=True)
            loss_ref[...] = -(num / t_sum)             # (TM, 1) per-row loss

    return kernel


def inter_instance_soft_entropy_loss(prob, hard_targets, *, tm=128, tk=256,
                                     use_bf16_matmul=False):
    """prob: (N, C) float32, hard_targets: (N,) int  ->  scalar float32 loss."""
    N, C = prob.shape
    t = hard_targets.astype(jnp.int32)
    x = prob.astype(jnp.float32)

    # inter = (sum_ij [t_i == t_j] - N) / N, computed in the wrapper (cheap XLA
    # op on the labels only) so the kernel never reduces an (N, N) mask.
    pair_sum = jnp.sum((t[:, None] == t[None, :]).astype(jnp.float32))
    inv_inter = jnp.float32(N) / (pair_sum - jnp.float32(N))
    scale = jnp.reshape(inv_inter, (1,))

    # ---- tiling / padding (lanes multiple of 128, sublanes of 8) -----------
    c_pad = _round_up(C, 128)
    tm_r = max(8, _round_up(min(tm, N), 8))
    if _round_up(N, tm_r) <= max(tk, 128):
        # Small batch: one reduction tile covering all of (padded) N, so the
        # lane-dim BlockSpec constraint is satisfied by "full dimension".
        n_pad = _round_up(N, tm_r)
        tk_r = n_pad
    else:
        tk_r = _round_up(tk, 128)
        n_pad = _round_up(N, math.lcm(tm_r, tk_r))
    TM, TK = tm_r, tk_r

    if c_pad != C or n_pad != N:
        x = jnp.pad(x, ((0, n_pad - N), (0, c_pad - C)))
    if n_pad != N:
        # Padded labels never match any real (or other padded) label.
        pad_ids = jnp.max(t) + 1 + jnp.arange(n_pad - N, dtype=jnp.int32)
        t = jnp.concatenate([t, pad_ids])

    tgt_col = t.reshape(n_pad, 1)
    tgt_row = t.reshape(1, n_pad)

    grid = (n_pad // TM, n_pad // TK)
    kernel = _make_kernel(C, use_bf16_matmul)

    # VMEM budget: double-buffered x k-tiles + resident x row tile (2 bufs)
    # + f32 accumulator.  Cap at 48 MiB so it also fits v7x (64 MiB physical).
    tile_bytes = 4 * c_pad * (2 * TK + 2 * TM + TM)
    vmem_limit = int(min(max(tile_bytes * 3 // 2, 32 * 1024 * 1024),
                         48 * 1024 * 1024))

    # TODO(synk): for very large class counts, add a C-block grid axis with an
    # online softmax; currently the full (padded) class row must fit in VMEM.
    per_row = pl.pallas_call(
        kernel,
        out_shape=jax.ShapeDtypeStruct((n_pad, 1), jnp.float32),
        grid=grid,
        in_specs=[
            pl.BlockSpec(memory_space=pltpu.MemorySpace.SMEM),    # 1/inter scalar
            pl.BlockSpec((TM, 1), lambda i, k: (i, 0)),           # ids (row tile)
            pl.BlockSpec((1, TK), lambda i, k: (0, k)),           # ids (k tile)
            pl.BlockSpec((TM, c_pad), lambda i, k: (i, 0)),       # x row tile (k-resident)
            pl.BlockSpec((TK, c_pad), lambda i, k: (k, 0)),       # x k tile
        ],
        out_specs=pl.BlockSpec((TM, 1), lambda i, k: (i, 0)),
        scratch_shapes=[pltpu.VMEM((TM, c_pad), jnp.float32)],
        compiler_params=pltpu.CompilerParams(
            dimension_semantics=("parallel", "arbitrary"),
            vmem_limit_bytes=vmem_limit,
        ),
    )(scale, tgt_col, tgt_row, x, x)

    # (-softmax(targets) * log_softmax(x)).mean(0).sum() == sum(per_row) / N
    return jnp.sum(per_row[:N, 0]) / jnp.float32(N)


def _reference(prob, hard_targets):
    """Pure-JAX reference mirroring the PyTorch forward."""
    N = hard_targets.shape[0]
    t = hard_targets
    ids_eq = (t[None, :] == t[:, None]).astype(jnp.float32) - jnp.eye(N, dtype=jnp.float32)
    inter = jnp.sum(ids_eq) / float(N)
    targets = (ids_eq / inter) @ prob
    log_probs = jax.nn.log_softmax(prob, axis=1)
    soft_t = jax.nn.softmax(targets, axis=1)
    return jnp.sum(jnp.mean(-soft_t * log_probs, axis=0))


if __name__ == "__main__":
    # Small shapes: batch of 16 samples, 96 classes (class axis gets lane-padded
    # to 128 inside the wrapper).  Repeated ids keep inter > 0.
    N, C = 16, 96
    key = jax.random.PRNGKey(0)
    prob = jax.random.normal(key, (N, C), dtype=jnp.float32)
    hard_targets = (jnp.arange(N, dtype=jnp.int32) % 5).astype(jnp.int32)

    # tm=8 so even this tiny example runs a (2, 1) grid with two "parallel"
    # row tiles plus the k-accumulator path.
    loss = inter_instance_soft_entropy_loss(prob, hard_targets, tm=8)
    loss = jax.block_until_ready(loss)

    ref = jax.block_until_ready(_reference(prob, hard_targets))
    assert jnp.allclose(loss, ref, rtol=1e-4, atol=1e-4), (loss, ref)

    # bf16 MXU operands (v6e / v7x fast path) — relaxed tolerance.
    loss_bf16 = jax.block_until_ready(
        inter_instance_soft_entropy_loss(prob, hard_targets, tm=8,
                                         use_bf16_matmul=True))
    assert jnp.allclose(loss_bf16, ref, rtol=2e-2, atol=2e-2), (loss_bf16, ref)

    print("KERNEL_OK")
</pallas_src>

<mosaic_0001>
module attributes {stable_mosaic.version = 11 : i64} {
  func.func @kernel(%arg0: i32, %arg1: i32, %arg2: memref<1xf32, #tpu.memory_space<smem>>, %arg3: memref<8x1xi32, #tpu.memory_space<vmem>>, %arg4: memref<1x16xi32, #tpu.memory_space<vmem>>, %arg5: memref<8x128xf32, #tpu.memory_space<vmem>>, %arg6: memref<16x128xf32, #tpu.memory_space<vmem>>, %arg7: memref<8x1xf32, #tpu.memory_space<vmem>>, %arg8: memref<8x128xf32, #tpu.memory_space<vmem>>) attributes {dimension_semantics = [#tpu.dimension_semantics<parallel>, #tpu.dimension_semantics<arbitrary>], iteration_bounds = array<i64: 2, 1>, scalar_prefetch = 0 : i64, scratch_operands = 1 : i64, tpu.core_type = #tpu.core_type<tc>, window_params = [{transform_indices = @transform_0, window_bounds = array<i64: 1>}, {transform_indices = @transform_1, window_bounds = array<i64: 8, 1>}, {transform_indices = @transform_2, window_bounds = array<i64: 1, 16>}, {transform_indices = @transform_3, window_bounds = array<i64: 8, 128>}, {transform_indices = @transform_4, window_bounds = array<i64: 16, 128>}, {transform_indices = @transform_5, window_bounds = array<i64: 8, 1>}]} {
    %c0_i32 = arith.constant 0 : i32
    %0 = arith.cmpi eq, %arg1, %c0_i32 : i32
    %1 = arith.extui %0 : i1 to i32
    %c0_i32_0 = arith.constant 0 : i32
    %2 = arith.cmpi ne, %1, %c0_i32_0 : i32
    scf.if %2 {
      %cst_12 = arith.constant 0.000000e+00 : f32
      %18 = vector.broadcast %cst_12 : f32 to vector<8x128xf32>
      %c0_13 = arith.constant 0 : index
      %c0_14 = arith.constant 0 : index
      %19 = vector.load %arg8[%c0_13, %c0_14] : memref<8x128xf32, #tpu.memory_space<vmem>>, vector<8x128xf32>
      tpu.vector_store %arg8[%c0_13, %c0_14], %18 {strides = array<i32>} : memref<8x128xf32, #tpu.memory_space<vmem>>, vector<8x128xf32>,
    } else {
    }
    %c0 = arith.constant 0 : index
    %c0_1 = arith.constant 0 : index
    %3 = vector.load %arg3[%c0, %c0_1] : memref<8x1xi32, #tpu.memory_space<vmem>>, vector<8x1xi32>
    %c0_2 = arith.constant 0 : index
    %c0_3 = arith.constant 0 : index
    %4 = vector.load %arg4[%c0_2, %c0_3] : memref<1x16xi32, #tpu.memory_space<vmem>>, vector<1x16xi32>
    %5 = vector.broadcast %3 : vector<8x1xi32> to vector<8x16xi32>
    %6 = vector.broadcast %4 : vector<1x16xi32> to vector<8x16xi32>
    %7 = arith.cmpi eq, %5, %6 : vector<8x16xi32>
    %8 = arith.extui %7 : vector<8x16xi1> to vector<8x16xi32>
    %9 = arith.sitofp %8 : vector<8x16xi32> to vector<8x16xf32>
    %c0_4 = arith.constant 0 : index
    %c0_5 = arith.constant 0 : index
    %10 = vector.load %arg6[%c0_4, %c0_5] : memref<16x128xf32, #tpu.memory_space<vmem>>, vector<16x128xf32>
    %c0_6 = arith.constant 0 : index
    %c0_7 = arith.constant 0 : index
    %11 = vector.load %arg8[%c0_6, %c0_7] : memref<8x128xf32, #tpu.memory_space<vmem>>, vector<8x128xf32>
    %cst = arith.constant dense<0.000000e+00> : vector<8x128xf32>
    %12 = tpu.matmul %9, %10, %cst {dimension_numbers = #tpu.dot_dimension_numbers<[1], [0], [0], [1], [0, 0, 1, 1], [], []>} : vector<8x16xf32>, vector<16x128xf32>, vector<8x128xf32> -> vector<8x128xf32>
    %13 = arith.addf %11, %12 : vector<8x128xf32>
    %c0_8 = arith.constant 0 : index
    %c0_9 = arith.constant 0 : index
    %14 = vector.load %arg8[%c0_8, %c0_9] : memref<8x128xf32, #tpu.memory_space<vmem>>, vector<8x128xf32>
    tpu.vector_store %arg8[%c0_8, %c0_9], %13 {strides = array<i32>} : memref<8x128xf32, #tpu.memory_space<vmem>>, vector<8x128xf32>,
    %c0_i32_10 = arith.constant 0 : i32
    %15 = arith.cmpi eq, %arg1, %c0_i32_10 : i32
    %16 = arith.extui %15 : i1 to i32
    %c0_i32_11 = arith.constant 0 : i32
    %17 = arith.cmpi ne, %16, %c0_i32_11 : i32
    scf.if %17 {
      %c0_12 = arith.constant 0 : index
      %18 = memref.load %arg2[%c0_12] : memref<1xf32, #tpu.memory_space<smem>>
      %c0_13 = arith.constant 0 : index
      %c0_14 = arith.constant 0 : index
      %19 = vector.load %arg5[%c0_13, %c0_14] : memref<8x128xf32, #tpu.memory_space<vmem>>, vector<8x128xf32>
      %c0_15 = arith.constant 0 : index
      %c0_16 = arith.constant 0 : index
      %20 = vector.load %arg8[%c0_15, %c0_16] : memref<8x128xf32, #tpu.memory_space<vmem>>, vector<8x128xf32>
      %21 = arith.subf %20, %19 : vector<8x128xf32>
      %22 = vector.broadcast %18 : f32 to vector<8x128xf32>
      %23 = arith.mulf %21, %22 : vector<8x128xf32>
      %24 = tpu.iota {dimensions = array<i32: 1>} : vector<8x128xi32>
      %c96_i32 = arith.constant 96 : i32
      %25 = vector.broadcast %c96_i32 : i32 to vector<8x128xi32>
      %26 = arith.cmpi slt, %24, %25 : vector<8x128xi32>
      %cst_17 = arith.constant -1.000000e+30 : f32
      %27 = vector.broadcast %cst_17 : f32 to vector<8x128xf32>
      %28 = arith.select %26, %19, %27 : vector<8x128xi1>, vector<8x128xf32>
      %cst_18 = arith.constant dense<0xFF800000> : vector<8xf32>
      %29 = vector.multi_reduction <maximumf>, %28, %cst_18 [1] : vector<8x128xf32> to vector<8xf32>
      %30 = vector.shape_cast %29 : vector<8xf32> to vector<8x1xf32>
      %31 = vector.broadcast %30 : vector<8x1xf32> to vector<8x128xf32>
      %32 = arith.subf %28, %31 : vector<8x128xf32>
      %33 = math.exp %32 : vector<8x128xf32>
      %cst_19 = arith.constant dense<0.000000e+00> : vector<8xf32>
      %34 = vector.multi_reduction <add>, %33, %cst_19 [1] : vector<8x128xf32> to vector<8xf32>
      %35 = vector.shape_cast %34 : vector<8xf32> to vector<8x1xf32>
      %36 = math.log %35 : vector<8x1xf32>
      %37 = arith.addf %36, %30 : vector<8x1xf32>
      %38 = vector.broadcast %37 : vector<8x1xf32> to vector<8x128xf32>
      %39 = arith.subf %19, %38 : vector<8x128xf32>
      %cst_20 = arith.constant -1.000000e+30 : f32
      %40 = vector.broadcast %cst_20 : f32 to vector<8x128xf32>
      %41 = arith.select %26, %23, %40 : vector<8x128xi1>, vector<8x128xf32>
      %cst_21 = arith.constant dense<0xFF800000> : vector<8xf32>
      %42 = vector.multi_reduction <maximumf>, %41, %cst_21 [1] : vector<8x128xf32> to vector<8xf32>
      %43 = vector.shape_cast %42 : vector<8xf32> to vector<8x1xf32>
      %44 = vector.broadcast %43 : vector<8x1xf32> to vector<8x128xf32>
      %45 = arith.subf %41, %44 : vector<8x128xf32>
      %46 = math.exp %45 : vector<8x128xf32>
      %cst_22 = arith.constant dense<0.000000e+00> : vector<8xf32>
      %47 = vector.multi_reduction <add>, %46, %cst_22 [1] : vector<8x128xf32> to vector<8xf32>
      %48 = vector.shape_cast %47 : vector<8xf32> to vector<8x1xf32>
      %49 = arith.mulf %46, %39 : vector<8x128xf32>
      %cst_23 = arith.constant 0.000000e+00 : f32
      %50 = vector.broadcast %cst_23 : f32 to vector<8x128xf32>
      %51 = arith.select %26, %49, %50 : vector<8x128xi1>, vector<8x128xf32>
      %cst_24 = arith.constant dense<0.000000e+00> : vector<8xf32>
      %52 = vector.multi_reduction <add>, %51, %cst_24 [1] : vector<8x128xf32> to vector<8xf32>
      %53 = vector.shape_cast %52 : vector<8xf32> to vector<8x1xf32>
      %54 = arith.divf %53, %48 : vector<8x1xf32>
      %cst_25 = arith.constant 0.000000e+00 : f32
      %55 = vector.broadcast %cst_25 : f32 to vector<8x1xf32>
      %56 = arith.subf %55, %54 : vector<8x1xf32>
      %c0_26 = arith.constant 0 : index
      %c0_27 = arith.constant 0 : index
      %57 = vector.load %arg7[%c0_26, %c0_27] : memref<8x1xf32, #tpu.memory_space<vmem>>, vector<8x1xf32>
      tpu.vector_store %arg7[%c0_26, %c0_27], %56 {strides = array<i32>} : memref<8x1xf32, #tpu.memory_space<vmem>>, vector<8x1xf32>,
    } else {
    }
    return
  }
  func.func @transform_0(%arg0: i32, %arg1: i32) -> i32 {
    %c0_i32 = arith.constant 0 : i32
    %c0_i32_0 = arith.constant 0 : i32
    return %c0_i32 : i32
  }
  func.func @transform_1(%arg0: i32, %arg1: i32) -> (i32, i32) {
    %c0_i32 = arith.constant 0 : i32
    %c0_i32_0 = arith.constant 0 : i32
    return %arg0, %c0_i32 : i32, i32
  }
  func.func @transform_2(%arg0: i32, %arg1: i32) -> (i32, i32) {
    %c0_i32 = arith.constant 0 : i32
    %c0_i32_0 = arith.constant 0 : i32
    return %c0_i32, %arg1 : i32, i32
  }
  func.func @transform_3(%arg0: i32, %arg1: i32) -> (i32, i32) {
    %c0_i32 = arith.constant 0 : i32
    %c0_i32_0 = arith.constant 0 : i32
    return %arg0, %c0_i32 : i32, i32
  }
  func.func @transform_4(%arg0: i32, %arg1: i32) -> (i32, i32) {
    %c0_i32 = arith.constant 0 : i32
    %c0_i32_0 = arith.constant 0 : i32
    return %arg1, %c0_i32 : i32, i32
  }
  func.func @transform_5(%arg0: i32, %arg1: i32) -> (i32, i32) {
    %c0_i32 = arith.constant 0 : i32
    %c0_i32_0 = arith.constant 0 : i32
    return %arg0, %c0_i32 : i32, i32
  }
}

</mosaic_0001>

<llo_original>
// kernel: tpu_custom_call.1
$region0: #{tpu_custom_call.1}
  #allocation0 [shape = 'u32[]', space=smem, size = 0x4, offset = 0x4, fixed_abs, tag = 'smem constant byte address 0x4 - core index']
  #allocation1 [shape = 'u32[144,128]{1,0:T(1,128)}', space=vmem, size = 0x12000, scoped, tag = 'internal scratch']
  #allocation2 [shape = 'f32[8,128]{1,0:T(8,128)}', space=vmem, size = 0x1000, scoped, tag = 'scratch operand']
  #allocation3 [shape = 'f32[1]{0:T(128)S(6)}', space=smem, size = 0x200, scoped, tag = 'scoped memory for tpu_custom_call.1']
  %s0 = inlined_call_operand.<no memory space> [shape: f32[1], index: 0, kind: input, shape index: {}]
  %s1 = inlined_call_operand.vmem [shape: s32[16,1], index: 1, kind: input, shape index: {}]
  %s2 = inlined_call_operand.vmem [shape: s32[1,16], index: 2, kind: input, shape index: {}]
  %s3 = inlined_call_operand.vmem [shape: f32[16,128], index: 3, kind: input, shape index: {}]
  %s4 = inlined_call_operand.hbm [shape: f32[16,128], index: 4, kind: input, shape index: {}]
  %s5 = inlined_call_operand.vmem [shape: f32[16,1], index: 5, kind: output, shape index: {}]
  %s6 = sld [smem:[#allocation0]]
  $region65: #{tpu_custom_call.1} parent=0
    _
  %s8 = ssub.s32 1, %s6
  %s9 = scalar_select 0, %s8, %s6
  %10 = sst [smem:[#allocation3]] %s0
  $region1: #{tpu_custom_call.1} parent=0
    #allocation4 [shape = 'u8[8192]{0}', space=vmem, size = 0x2000, scoped, tag = 'input window, operand 4, single buffered']
    #allocation5 [shape = 's32[2]{0}', space=sflag, size = 0x8, scoped, tag = 'scoped memory for tpu_custom_call.1']
    %11 = vsyncpa [#allocation5], 0
    loop: start=0, step=1, limit=4
    $region2: #{tpu_custom_call.1} parent=1 // loop_pre_header
      _
    $region3: #{tpu_custom_call.1} parent=1 // loop_header
      %s13 = sphi 0, %s17
      %p14 = scmp.ge.s32.totalorder %s13, 4
      %s20 = sphi 0, %s32
      %s21 = sphi 0, %s28
      %s22 = sphi 0, %s20
      %s23 = sphi 0, %s21
      %s24 = sphi 0, %s22
      %s25 = sphi 0, %s23
      %s33 = sphi 0, %s33
      %s35 = sphi 0, %s33
      %s36 = sphi 0, %s35
      %s50 = sphi 0, %s36
      %s56 = sphi 0, %s58
      %s59 = sphi 0, %s56
      %s60 = sphi 0, %s59
      %s76 = sphi 0, %s60
      %s82 = sphi 0, %s84
      %s85 = sphi 0, %s82
      %s86 = sphi 0, %s85
      %s102 = sphi 0, %s86
      %s108 = sphi 0, %s110
      %s111 = sphi 0, %s108
      %s112 = sphi 0, %s111
      %s128 = sphi 0, %s112
      %s134 = sphi 0, %s136
      %s137 = sphi 0, %s134
      %s138 = sphi 0, %s137
      %s154 = sphi 0, %s138
      %s160 = sphi 0, %s162
      %s163 = sphi 0, %s160
      %s164 = sphi 0, %s163
      %s180 = sphi 0, %s164
    $region4: #{tpu_custom_call.1} parent=1 // loop_header_branch
      %16 = sbr.rel (%p14) target = $region8
    $region5: #{tpu_custom_call.1} parent=1 // loop_body
      %s18 = ssub.s32 %s13, 1
      %s19 = ssub.s32 %s13, 2
      %s26 = sadd.s32 1, %s21
      %p27 = scmp.ge.s32.totalorder %s26, 1
      %s28 = scalar_select %p27, 0, %s26
      %s29 = sadd.s32 1, %s20
      %s30 = scalar_select %p27, %s29, %s20
      %p31 = scmp.ge.s32.totalorder %s30, 2
      %s32 = scalar_select %p31, 0, %s30
      %s34 = sadd.s32 %s33, 1
      %p37 = scmp.eq.s32.totalorder %s13, 1
      %p38 = scmp.ne.s32.totalorder %s33, %s35
      %p39 = scmp.eq.s32.totalorder %s13, 0
      %p40 = por %p38, %p39
      %p41 = scmp.ne.s32.totalorder %s33, %s35
      %p42 = scmp.eq.s32.totalorder %s18, 1
      %p43 = por %p41, %p42
      %p44 = scmp.ne.s32.totalorder %s35, %s36
      %p45 = scmp.eq.s32.totalorder %s18, 0
      %p46 = por %p44, %p45
      %p47 = scmp.ne.s32.totalorder %s35, %s36
      %p48 = scmp.eq.s32.totalorder %s19, 1
      %p49 = por %p47, %p48
      %p51 = scmp.ne.s32.totalorder %s36, %s50
      %p52 = scmp.eq.s32.totalorder %s19, 0
      %p53 = por %p51, %p52
      %s54 = ssub.s32 %s20, %s32
      %p55 = scmp.eq.s32.totalorder %s54, 0
      %s57 = sadd.s32 %s56, 1
      %s58 = scalar_select %p55, %s56, %s57
      %p61 = pneg %p55
      %p62 = scmp.eq.s32.totalorder %s13, 1
      %p63 = por %p61, %p62
      %p64 = scmp.ne.s32.totalorder %s56, %s59
      %p65 = scmp.eq.s32.totalorder %s13, 0
      %p66 = por %p64, %p65
      %p67 = scmp.ne.s32.totalorder %s56, %s59
      %p68 = scmp.eq.s32.totalorder %s18, 1
      %p69 = por %p67, %p68
      %p70 = scmp.ne.s32.totalorder %s59, %s60
      %p71 = scmp.eq.s32.totalorder %s18, 0
      %p72 = por %p70, %p71
      %p73 = scmp.ne.s32.totalorder %s59, %s60
      %p74 = scmp.eq.s32.totalorder %s19, 1
      %p75 = por %p73, %p74
      %p77 = scmp.ne.s32.totalorder %s60, %s76
      %p78 = scmp.eq.s32.totalorder %s19, 0
      %p79 = por %p77, %p78
      %s80 = ssub.s32 %s21, %s28
      %p81 = scmp.eq.s32.totalorder %s80, 0
      %s83 = sadd.s32 %s82, 1
      %s84 = scalar_select %p81, %s82, %s83
      %p87 = pneg %p81
      %p88 = scmp.eq.s32.totalorder %s13, 1
      %p89 = por %p87, %p88
      %p90 = scmp.ne.s32.totalorder %s82, %s85
      %p91 = scmp.eq.s32.totalorder %s13, 0
      %p92 = por %p90, %p91
      %p93 = scmp.ne.s32.totalorder %s82, %s85
      %p94 = scmp.eq.s32.totalorder %s18, 1
      %p95 = por %p93, %p94
      %p96 = scmp.ne.s32.totalorder %s85, %s86
      %p97 = scmp.eq.s32.totalorder %s18, 0
      %p98 = por %p96, %p97
      %p99 = scmp.ne.s32.totalorder %s85, %s86
      %p100 = scmp.eq.s32.totalorder %s19, 1
      %p101 = por %p99, %p100
      %p103 = scmp.ne.s32.totalorder %s86, %s102
      %p104 = scmp.eq.s32.totalorder %s19, 0
      %p105 = por %p103, %p104
      %s106 = ssub.s32 %s20, %s32
      %p107 = scmp.eq.s32.totalorder %s106, 0
      %s109 = sadd.s32 %s108, 1
      %s110 = scalar_select %p107, %s108, %s109
      %p113 = pneg %p107
      %p114 = scmp.eq.s32.totalorder %s13, 1
      %p115 = por %p113, %p114
      %p116 = scmp.ne.s32.totalorder %s108, %s111
      %p117 = scmp.eq.s32.totalorder %s13, 0
      %p118 = por %p116, %p117
      %p119 = scmp.ne.s32.totalorder %s108, %s111
      %p120 = scmp.eq.s32.totalorder %s18, 1
      %p121 = por %p119, %p120
      %p122 = scmp.ne.s32.totalorder %s111, %s112
      %p123 = scmp.eq.s32.totalorder %s18, 0
      %p124 = por %p122, %p123
      %p125 = scmp.ne.s32.totalorder %s111, %s112
      %p126 = scmp.eq.s32.totalorder %s19, 1
      %p127 = por %p125, %p126
      %p129 = scmp.ne.s32.totalorder %s112, %s128
      %p130 = scmp.eq.s32.totalorder %s19, 0
      %p131 = por %p129, %p130
      %s132 = ssub.s32 %s21, %s28
      %p133 = scmp.eq.s32.totalorder %s132, 0
      %s135 = sadd.s32 %s134, 1
      %s136 = scalar_select %p133, %s134, %s135
      %p139 = pneg %p133
      %p140 = scmp.eq.s32.totalorder %s13, 1
      %p141 = por %p139, %p140
      %p142 = scmp.ne.s32.totalorder %s134, %s137
      %p143 = scmp.eq.s32.totalorder %s13, 0
      %p144 = por %p142, %p143
      %p145 = scmp.ne.s32.totalorder %s134, %s137
      %p146 = scmp.eq.s32.totalorder %s18, 1
      %p147 = por %p145, %p146
      %p148 = scmp.ne.s32.totalorder %s137, %s138
      %p149 = scmp.eq.s32.totalorder %s18, 0
      %p150 = por %p148, %p149
      %p151 = scmp.ne.s32.totalorder %s137, %s138
      %p152 = scmp.eq.s32.totalorder %s19, 1
      %p153 = por %p151, %p152
      %p155 = scmp.ne.s32.totalorder %s138, %s154
      %p156 = scmp.eq.s32.totalorder %s19, 0
      %p157 = por %p155, %p156
      %s158 = ssub.s32 %s20, %s32
      %p159 = scmp.eq.s32.totalorder %s158, 0
      %s161 = sadd.s32 %s160, 1
      %s162 = scalar_select %p159, %s160, %s161
      %p165 = pneg %p159
      %p166 = scmp.eq.s32.totalorder %s13, 1
      %p167 = por %p165, %p166
      %p168 = scmp.ne.s32.totalorder %s160, %s163
      %p169 = scmp.eq.s32.totalorder %s13, 0
      %p170 = por %p168, %p169
      %p171 = scmp.ne.s32.totalorder %s160, %s163
      %p172 = scmp.eq.s32.totalorder %s18, 1
      %p173 = por %p171, %p172
      %p174 = scmp.ne.s32.totalorder %s163, %s164
      %p175 = scmp.eq.s32.totalorder %s18, 0
      %p176 = por %p174, %p175
      %p177 = scmp.ne.s32.totalorder %s163, %s164
      %p178 = scmp.eq.s32.totalorder %s19, 1
      %p179 = por %p177, %p178
      %p181 = scmp.ne.s32.totalorder %s164, %s180
      %p182 = scmp.eq.s32.totalorder %s19, 0
      %p183 = por %p181, %p182
      %p184 = scmp.le.s32.totalorder 1, %s13
      %p185 = scmp.lt.s32.totalorder %s13, 3
      %p186 = pnand %p184, %p185
      %p187 = pneg %p186
      // Predicated region
      $region9: #{tpu_custom_call.1} parent=5 // pred_check
        _
      $region10: #{tpu_custom_call.1} parent=5 // pred_check_branch
        %189 = sbr.rel (%p186) target = $region12
      $region11: #{tpu_custom_call.1} parent=5 // pred_region
        %s190 = ssub.s32 %s13, 1
        // Predicated region
        $region13: #{tpu_custom_call.1} parent=11 // pred_check
          %p191 = pneg %p46
        $region14: #{tpu_custom_call.1} parent=11 // pred_check_branch
          %193 = sbr.rel (%p191) target = $region16
        $region15: #{tpu_custom_call.1} parent=11 // pred_region
          _
        $region16: #{tpu_custom_call.1} parent=11 // pred_fallthru
          _
        // Predicated region
        $region17: #{tpu_custom_call.1} parent=11 // pred_check
          %p194 = pneg %p98
        $region18: #{tpu_custom_call.1} parent=11 // pred_check_branch
          %196 = sbr.rel (%p194) target = $region20
        $region19: #{tpu_custom_call.1} parent=11 // pred_region
          %p197 = scmp.lt.s32.totalorder %s23, 0
          %s198 = scalar_select %p197, %s23, 0
          %s199 = scalar_lea.vmem %s2, %s198
        $region20: #{tpu_custom_call.1} parent=11 // pred_fallthru
          _
        // Predicated region
        $region21: #{tpu_custom_call.1} parent=11 // pred_check
          %p200 = pneg %p150
        $region22: #{tpu_custom_call.1} parent=11 // pred_check_branch
          %202 = sbr.rel (%p200) target = $region24
        $region23: #{tpu_custom_call.1} parent=11 // pred_region
          %s203 = smul.u32 2, %s23
          %s205 = ssub.s32 256, 256
          %206 = vsyncadd [#allocation5], %s205
          %s207 = smul.addr %s203, 128
          %s208 = scalar_lea.hbm %s4, %s207
          %s209 = sshll.u32 [#allocation4], 4
          %s210 = int_to_ptr.vmem [resolvable:$true] %s209
          %215 = dma.hbm_to_vmem [thread:$0]  %s208, 256, %s210, [#allocation5], 128, 128, 8
        $region24: #{tpu_custom_call.1} parent=11 // pred_fallthru
          _
      $region12: #{tpu_custom_call.1} parent=5 // pred_fallthru
        _
      %p216 = scmp.lt.s32.totalorder %s13, 2
      // Predicated region
      $region25: #{tpu_custom_call.1} parent=5 // pred_check
        %p217 = pneg %p216
      $region26: #{tpu_custom_call.1} parent=5 // pred_check_branch
        %219 = sbr.rel (%p217) target = $region28
      $region27: #{tpu_custom_call.1} parent=5 // pred_region
        // Predicated region
        $region29: #{tpu_custom_call.1} parent=27 // pred_check
          %p220 = pneg %p66
        $region30: #{tpu_custom_call.1} parent=27 // pred_check_branch
          %222 = sbr.rel (%p220) target = $region32
        $region31: #{tpu_custom_call.1} parent=27 // pred_region
          %p223 = scmp.lt.s32.totalorder %s20, 1
          %s224 = scalar_select %p223, %s20, 1
          %s225 = smul.addr %s224, 8
          %s226 = scalar_lea.vmem %s1, %s225
        $region32: #{tpu_custom_call.1} parent=27 // pred_fallthru
          _
        // Predicated region
        $region33: #{tpu_custom_call.1} parent=27 // pred_check
          %p227 = pneg %p118
        $region34: #{tpu_custom_call.1} parent=27 // pred_check_branch
          %229 = sbr.rel (%p227) target = $region36
        $region35: #{tpu_custom_call.1} parent=27 // pred_region
          %p230 = scmp.lt.s32.totalorder %s20, 1
          %s231 = scalar_select %p230, %s20, 1
          %s232 = smul.addr %s231, 8
          %s233 = scalar_lea.vmem %s3, %s232
        $region36: #{tpu_custom_call.1} parent=27 // pred_fallthru
          _
      $region28: #{tpu_custom_call.1} parent=5 // pred_fallthru
        _
      %p234 = scmp.le.s32.totalorder 1, %s13
      %p235 = scmp.lt.s32.totalorder %s13, 3
      %p236 = pnand %p234, %p235
      %p237 = pneg %p236
      // Predicated region
      $region37: #{tpu_custom_call.1} parent=5 // pred_check
        _
      $region38: #{tpu_custom_call.1} parent=5 // pred_check_branch
        %239 = sbr.rel (%p236) target = $region40
      $region39: #{tpu_custom_call.1} parent=5 // pred_region
        %s240 = ssub.s32 %s13, 1
        // Predicated region
        $region41: #{tpu_custom_call.1} parent=39 // pred_check
          %p241 = pneg %p150
        $region42: #{tpu_custom_call.1} parent=39 // pred_check_branch
          %243 = sbr.rel (%p241) target = $region44
        $region43: #{tpu_custom_call.1} parent=39 // pred_region
          %244 = dma.done [#allocation5], 256
        $region44: #{tpu_custom_call.1} parent=39 // pred_fallthru
          _
        %p245 = pneg %p46
        %p246 = pneg %p43
        %p247 = scmp.lt.s32.totalorder %s22, 1
        %s248 = scalar_select %p247, %s22, 1
        %s249 = smul.addr %s248, 8
        %s250 = scalar_lea.vmem %s1, %s249
        %p251 = pneg %p72
        %p252 = pneg %p69
        %p253 = scmp.lt.s32.totalorder %s23, 0
        %s254 = scalar_select %p253, %s23, 0
        %s255 = scalar_lea.vmem %s2, %s254
        %p256 = pneg %p98
        %p257 = pneg %p95
        %p258 = scmp.lt.s32.totalorder %s22, 1
        %s259 = scalar_select %p258, %s22, 1
        %s260 = smul.addr %s259, 8
        %s261 = scalar_lea.vmem %s3, %s260
        %p262 = pneg %p124
        %p263 = pneg %p121
        %p264 = pneg %p150
        %p265 = pneg %p147
        %p266 = pneg %p176
        %p267 = pneg %p173
        %p268 = scmp.lt.s32.totalorder %s22, 1
        %s269 = scalar_select %p268, %s22, 1
        %s270 = smul.addr %s269, 8
        %s271 = scalar_lea.vmem %s5, %s270
        %p272 = scmp.lt.s32.totalorder %s22, 1
        %s273 = scalar_select %p272, %s22, 1
        %s274 = smul.addr %s273, 8
        %s275 = scalar_lea.vmem %s1, %s274
        %p276 = scmp.lt.s32.totalorder %s23, 0
        %s277 = scalar_select %p276, %s23, 0
        %s278 = scalar_lea.vmem %s2, %s277
        %p279 = scmp.lt.s32.totalorder %s22, 1
        %s280 = scalar_select %p279, %s22, 1
        %s281 = smul.addr %s280, 8
        %s282 = scalar_lea.vmem %s3, %s281
        %s283 = smul.u32 2, %s23
        %p284 = scmp.lt.s32.totalorder %s22, 1
        %s285 = scalar_select %p284, %s22, 1
        %s286 = smul.addr %s285, 8
        %s287 = scalar_lea.vmem %s5, %s286
        %p288 = scmp.eq.s32.totalorder %s23, 0
        // Predicated region
        $region45: #{tpu_custom_call.1} parent=39 // pred_check
          %p289 = pneg %p288
        $region46: #{tpu_custom_call.1} parent=39 // pred_check_branch
          %291 = sbr.rel (%p289) target = $region48
        $region47: #{tpu_custom_call.1} parent=39 // pred_region
          %292 = vst [vmem:[#allocation2] sm:$0xff] 0.0
        $region48: #{tpu_custom_call.1} parent=39 // pred_fallthru
          _
        %v293 = vld [vmem:[%s275] sm:$0xff]
        %v294 = vld [vmem:[%s278] sm:$0x1]
        %295 = vset.pattern.permute.xlu0 0
        %296 = vperm.xlu0 %295, %v293
        %v297 = vpop.permute.xlu0 %296
        %v298 = vlaneseq
        %v299 = vshrl.u32 %v298, 7
        %v300 = vsub.s32 0, %v299
        %v301 = vrot.slane %v294, %v300
        %vm302 = vcmp.eq.s32.totalorder %v297, %v301
        %v303 = vsel %vm302, 1, 0
        %v304 = vcvt.s32.f32 %v303
        %v305 = vld [vmem:[#allocation4] sm:$0xff]
        %v306 = vld [vmem:[#allocation4 + $0x8] sm:$0xff]
        %v307 = vld [vmem:[#allocation2] sm:$0xff]
        %vm308 = vcmask 130048
        %v310 = vsel %vm308, %v304, 0
        %312 = vmatprep.subr.mxu0 0.0
        %313 = vmatpush1.msra.mxu0 0.0
        %314 = vmatprep.subr.mxu0 0.0
        %315 = vmatpush1.msra.mxu0 0.0
        %316 = vmatprep.subr.mxu0 0.0
        %317 = vmatpush1.msra.mxu0 0.0
        %318 = vmatprep.subr.mxu0 0.0
        %319 = vmatpush1.msra.mxu0 0.0
        %320 = vmatprep.subr.mxu0 0.0
        %321 = vmatpush1.msra.mxu0 0.0
        %322 = vmatprep.subr.mxu0 0.0
        %323 = vmatpush1.msra.mxu0 0.0
        %324 = vmatprep.subr.mxu0 0.0
        %325 = vmatpush1.msra.mxu0 0.0
        %326 = vmatprep.subr.mxu0 0.0
        %327 = vmatpush1.msra.mxu0 0.0
        %328 = vmatprep.subr.mxu0 0.0
        %329 = vmatpush1.msra.mxu0 0.0
        %330 = vmatprep.subr.mxu0 0.0
        %331 = vmatpush1.msra.mxu0 0.0
        %332 = vmatprep.subr.mxu0 0.0
        %333 = vmatpush1.msra.mxu0 0.0
        %334 = vmatprep.subr.mxu0 0.0
        %335 = vmatpush1.msra.mxu0 0.0
        %336 = vmatprep.subr.mxu0 0.0
        %337 = vmatpush1.msra.mxu0 0.0
        %338 = vmatprep.subr.mxu0 0.0
        %339 = vmatpush1.msra.mxu0 0.0
        %340 = vmatprep.subr.mxu0 0.0
        %341 = vmatpush1.msra.mxu0 %v306
        %342 = vmatprep.subr.mxu0 0.0
        %343 = vmatpush1.msra.mxu0 %v305
        %344 = vmatprep.subr.mxu0 0.0
        %345 = vmatpush2.msra.mxu0 0.0
        %346 = vmatprep.subr.mxu0 0.0
        %347 = vmatpush2.msra.mxu0 0.0
        %348 = vmatprep.subr.mxu0 0.0
        %349 = vmatpush2.msra.mxu0 0.0
        %350 = vmatprep.subr.mxu0 0.0
        %351 = vmatpush2.msra.mxu0 0.0
        %352 = vmatprep.subr.mxu0 0.0
        %353 = vmatpush2.msra.mxu0 0.0
        %354 = vmatprep.subr.mxu0 0.0
        %355 = vmatpush2.msra.mxu0 0.0
        %356 = vmatprep.subr.mxu0 0.0
        %357 = vmatpush2.msra.mxu0 0.0
        %358 = vmatprep.subr.mxu0 0.0
        %359 = vmatpush2.msra.mxu0 0.0
        %360 = vmatprep.subr.mxu0 0.0
        %361 = vmatpush2.msra.mxu0 0.0
        %362 = vmatprep.subr.mxu0 0.0
        %363 = vmatpush2.msra.mxu0 0.0
        %364 = vmatprep.subr.mxu0 0.0
        %365 = vmatpush2.msra.mxu0 0.0
        %366 = vmatprep.subr.mxu0 0.0
        %367 = vmatpush2.msra.mxu0 0.0
        %368 = vmatprep.subr.mxu0 0.0
        %369 = vmatpush2.msra.mxu0 0.0
        %370 = vmatprep.subr.mxu0 0.0
        %371 = vmatpush2.msra.mxu0 0.0
        %372 = vmatprep.subr.mxu0 0.0
        %373 = vmatpush2.msra.mxu0 0.0
        %374 = vmatprep.subr.mxu0 0.0
        %375 = vmatpush2.msra.mxu0 0.0
        %376 = vmatprep.mubr.f32.mxu0 0.0
        %377 = vmatmul.mubr.f32.gmra.mxu0 %v310
        %v378 = vpop.f32.mrf.mxu0
        %v379 = vadd.f32 0.0, %v378
        %v380 = vpop.f32.mrf.mxu0
        %381 = vdwg.mxu0
        %v382 = vadd.f32 %v307, %v379
        %383 = vst [vmem:[#allocation2] sm:$0xff] %v382
        // Predicated region
        $region49: #{tpu_custom_call.1} parent=39 // pred_check
          %p384 = pneg %p288
        $region50: #{tpu_custom_call.1} parent=39 // pred_check_branch
          %386 = sbr.rel (%p384) target = $region52
        $region51: #{tpu_custom_call.1} parent=39 // pred_region
          %s387 = sld [smem:[#allocation3]]
          %v388 = vld [vmem:[%s282] sm:$0xff]
          %v389 = vld [vmem:[#allocation2] sm:$0xff]
          %v390 = vsub.f32 %v389, %v388
          %v391 = vstv %s387
          %v392 = vmul.f32 %v390, %v391
          %v393 = vlaneseq
          %v394 = vand.u32 %v393, 127
          %vm395 = vcmp.lt.s32.totalorder %v394, 96
          %v396 = vsel %vm395, %v388, -1e+30
          %397 = vmax.xlane.f32.xlu0 %v396
          %v398 = vpop.xlane.xlu0 %397
          %v399 = vsub.f32 %v396, %v398
          %v400 = vmul.f32 %v399, 1.442695
          %v401 = vpow.pop %v400
          %402 = vadd.xlane.f32.xlu0 %v401
          %v403 = vpop.xlane.xlu0 %402
          %v404 = vlog2.pop %v403
          %v405 = vmul.f32 %v404, 0.6931472
          %v406 = vadd.f32 %v405, %v398
          %v407 = vsub.f32 %v388, %v406
          %v408 = vsel %vm395, %v392, -1e+30
          %409 = vmax.xlane.f32.xlu0 %v408
          %v410 = vpop.xlane.xlu0 %409
          %v411 = vsub.f32 %v408, %v410
          %v412 = vmul.f32 %v411, 1.442695
          %v413 = vpow.pop %v412
          %414 = vadd.xlane.f32.xlu0 %v413
          %v415 = vpop.xlane.xlu0 %414
          %v416 = vmul.f32 %v413, %v407
          %v417 = vsel %vm395, %v416, 0.0
          %418 = vadd.xlane.f32.xlu0 %v417
          %v419 = vpop.xlane.xlu0 %418
          %v420 = vrcp.pop %v415
          %v421 = vmul.f32 %v419, %v420
          %v422 = vsub.f32 0.0, %v421
          %vm423 = vcmask 7168
          %424 = vst.msk [vmem:[%s287] sm:$0xff] %vm423, %v422
        $region52: #{tpu_custom_call.1} parent=39 // pred_fallthru
          _
        %p425 = scmp.lt.s32.totalorder %s22, 1
        %s426 = scalar_select %p425, %s22, 1
        %s427 = smul.addr %s426, 8
        %s428 = scalar_lea.vmem %s5, %s427
        // Predicated region
        $region53: #{tpu_custom_call.1} parent=39 // pred_check
          %p429 = pneg %p173
        $region54: #{tpu_custom_call.1} parent=39 // pred_check_branch
          %431 = sbr.rel (%p429) target = $region56
        $region55: #{tpu_custom_call.1} parent=39 // pred_region
          _
        $region56: #{tpu_custom_call.1} parent=39 // pred_fallthru
          _
      $region40: #{tpu_custom_call.1} parent=5 // pred_fallthru
        _
      %p432 = scmp.le.s32.totalorder 2, %s13
      // Predicated region
      $region57: #{tpu_custom_call.1} parent=5 // pred_check
        %p433 = pneg %p432
      $region58: #{tpu_custom_call.1} parent=5 // pred_check_branch
        %435 = sbr.rel (%p433) target = $region60
      $region59: #{tpu_custom_call.1} parent=5 // pred_region
        %s436 = ssub.s32 %s13, 2
        // Predicated region
        $region61: #{tpu_custom_call.1} parent=59 // pred_check
          %p437 = pneg %p179
        $region62: #{tpu_custom_call.1} parent=59 // pred_check_branch
          %439 = sbr.rel (%p437) target = $region64
        $region63: #{tpu_custom_call.1} parent=59 // pred_region
          %p440 = scmp.lt.s32.totalorder %s24, 1
          %s441 = scalar_select %p440, %s24, 1
          %s442 = smul.addr %s441, 8
          %s443 = scalar_lea.vmem %s5, %s442
        $region64: #{tpu_custom_call.1} parent=59 // pred_fallthru
          _
      $region60: #{tpu_custom_call.1} parent=5 // pred_fallthru
        _
    $region6: #{tpu_custom_call.1} parent=1 // loop_footer
      %s17 = sadd.s32 1, %s13
    $region7: #{tpu_custom_call.1} parent=1 // loop_footer_branch
      %12 = sbr.rel target = $region3
    $region8: #{tpu_custom_call.1} parent=1 // loop_exit
      _
    %444 = vsyncpa [#allocation5], 1
    %s445 = scalar_lea.sflag [#allocation5], 1
    %446 = vsyncpa %s445, 1

</llo_original>
